<compile_context>
chip_gen: v7x
topology: tpu7x:2x2x1
jax: 0.10.0
libtpu: 0.0.40
codegen_flags: <defaults>
</compile_context>

<pallas_src>
from functools import partial

import jax
import jax.numpy as jnp
from jax.experimental import pallas as pl
from jax.experimental.pallas import tpu as pltpu


# ----------------------------------------------------------------------------
# Pallas kernels
# ----------------------------------------------------------------------------
def _add_periodic_noise_kernel(x_ref, noise_ref, scale_ref, o_ref, *, block_t, period):
    """out = x + scale * period[(j*block_t + t) % period] for the current (i, j) tile.

    noise_ref is the resident (block_b, period) noise block; it is re-sliced per time
    tile instead of re-fetched from HBM.
    """
    if block_t == period:
        n = noise_ref[...]
    else:
        t0 = pl.multiple_of(
            (pl.program_id(1) % (period // block_t)) * block_t, 128
        )
        n = noise_ref[:, pl.ds(t0, block_t)]
    o_ref[...] = (x_ref[...] + scale_ref[...] * n).astype(o_ref.dtype)


def _add_scaled_noise_kernel(x_ref, noise_ref, scale_ref, o_ref):
    """Fallback streaming kernel: out = x + scale * noise (noise already (B, T))."""
    o_ref[...] = (x_ref[...] + scale_ref[...] * noise_ref[...]).astype(o_ref.dtype)


# ----------------------------------------------------------------------------
# Tile selection
# ----------------------------------------------------------------------------
def _round_up(x, m):
    return (x + m - 1) // m * m


def _largest_aligned_divisor(n, unit, cap):
    """Largest multiple of `unit` that divides `n` and is <= cap (None if none)."""
    if cap < unit or n % unit != 0:
        return None
    m = n // unit
    q_cap = cap // unit
    best = None
    for q in range(1, m + 1):
        if q > q_cap:
            break
        if m % q == 0:
            best = q
    return best * unit if best is not None else None


def _choose_periodic_tiles(B, T, P, itemsize, target_block_bytes,
                           noise_vmem_budget=16 << 20):
    """Pick (block_b, block_t) with block_t a 128-aligned divisor of the period P."""
    Bp = _round_up(B, 8)
    Tp = _round_up(max(T, 1), 128)

    t_cap = min(P, Tp, 16 * 1024)                 # <=64 KiB of lanes per row
    block_t = _largest_aligned_divisor(P, 128, t_cap)
    if block_t is None:
        return None                               # period not 128-lane friendly

    rows = max(8, (target_block_bytes // (block_t * itemsize)) // 8 * 8)
    # Keep the resident (block_b, P) noise block (double-buffered) within budget.
    noise_rows = max(8, (noise_vmem_budget // (2 * P * itemsize)) // 8 * 8)
    block_b = B if B <= 8 else int(min(Bp, rows, noise_rows))

    # v7x megacore: make sure both TensorCores get work when there is enough of it.
    total_bytes = Bp * Tp * itemsize
    min_blocks = 4 if total_bytes >= 4 * target_block_bytes else 2
    n_blocks = lambda bb, bt: pl.cdiv(B, bb) * pl.cdiv(T, bt)
    while n_blocks(block_b, block_t) < min_blocks and block_b > 8:
        block_b = max(8, (block_b // 2) // 8 * 8)
    while n_blocks(block_b, block_t) < min_blocks:
        bt = _largest_aligned_divisor(P, 128, block_t // 2)
        if bt is None:
            break
        block_t = bt
    return block_b, block_t


def _choose_streaming_tiles(B, T, itemsize, target_block_bytes):
    """Tiles for the fallback kernel (noise already materialized as (B, T))."""
    Bp = _round_up(B, 8)
    Tp = _round_up(max(T, 1), 128)
    block_t = T if T < 128 else min(Tp, 16 * 1024)
    rows = max(8, (target_block_bytes // (max(block_t, 1) * itemsize)) // 8 * 8)
    block_b = B if B <= 8 else int(min(Bp, rows))

    total_bytes = Bp * Tp * itemsize
    min_blocks = 4 if total_bytes >= 4 * target_block_bytes else 2
    n_blocks = lambda bb, bt: pl.cdiv(B, bb) * pl.cdiv(T, bt)
    while n_blocks(block_b, block_t) < min_blocks and block_b > 8:
        block_b = max(8, (block_b // 2) // 8 * 8)
    while n_blocks(block_b, block_t) < min_blocks and block_t > 128:
        block_t = max(128, _round_up(block_t // 2, 128))
    return block_b, block_t


# ----------------------------------------------------------------------------
# pallas_call wrappers
# ----------------------------------------------------------------------------
def add_scaled_noise_pallas(x, noise, scale, *, target_block_bytes=2 << 20):
    """Fallback: out[b, t] = x[b, t] + scale[b, 0] * noise[b, t] with noise (B, T)."""
    B, T = x.shape
    itemsize = 4
    block_b, block_t = _choose_streaming_tiles(B, T, itemsize, target_block_bytes)
    block_bytes = block_b * block_t * itemsize
    # 3 streams (x, noise, out), each double-buffered, + lane-padded scale + slack.
    vmem_need = 3 * 2 * block_bytes + 2 * block_b * 128 * itemsize + (2 << 20)
    vmem_limit = int(min(max(vmem_need, 16 << 20), 48 << 20))
    grid = (pl.cdiv(B, block_b), pl.cdiv(T, block_t))

    return pl.pallas_call(
        _add_scaled_noise_kernel,
        out_shape=jax.ShapeDtypeStruct((B, T), x.dtype),
        grid_spec=pltpu.PrefetchScalarGridSpec(
            num_scalar_prefetch=0,
            grid=grid,
            in_specs=[
                pl.BlockSpec((block_b, block_t), lambda i, j: (i, j)),
                pl.BlockSpec((block_b, block_t), lambda i, j: (i, j)),
                pl.BlockSpec((block_b, 1), lambda i, j: (i, 0)),
            ],
            out_specs=pl.BlockSpec((block_b, block_t), lambda i, j: (i, j)),
        ),
        compiler_params=pltpu.CompilerParams(
            dimension_semantics=("parallel", "parallel"),
            vmem_limit_bytes=vmem_limit,
        ),
        input_output_aliases={0: 0},  # in-place: x is donated by the jitted caller
    )(x, noise, scale)


def add_periodic_noise_pallas(x, noise_period, scale, *, target_block_bytes=2 << 20):
    """out[b, t] = x[b, t] + scale[b, 0] * noise_period[b, t % P]

    x: (B, T) f32;  noise_period: (B, P) f32 (rms-normalized);  scale: (B, 1) f32.
    The period is kept resident in VMEM per batch block, so noise HBM traffic is
    only B*P*4 bytes regardless of T.
    """
    B, T = x.shape
    P = noise_period.shape[-1]
    itemsize = 4

    tiles = _choose_periodic_tiles(B, T, P, itemsize, target_block_bytes)
    if tiles is None:
        # Period not a multiple of 128 lanes: fall back to materialized tiled noise.
        reps = -(-T // P)
        noise_full = jnp.tile(noise_period, (1, reps))[:, :T]
        return add_scaled_noise_pallas(x, noise_full, scale,
                                       target_block_bytes=target_block_bytes)

    block_b, block_t = tiles
    block_bytes = block_b * block_t * itemsize
    # Real VMEM accounting: x/out double-buffered tiles + resident noise period
    # (also double-buffered by Pallas) + lane-padded scale + slack.  Capped at
    # 48 MiB so it stays 64-MiB-aware on v7x.
    vmem_need = (2 * 2 * block_bytes
                 + 2 * block_b * P * itemsize
                 + 2 * block_b * 128 * itemsize
                 + (2 << 20))
    vmem_limit = int(min(max(vmem_need, 16 << 20), 48 << 20))
    grid = (pl.cdiv(B, block_b), pl.cdiv(T, block_t))

    kernel = partial(_add_periodic_noise_kernel, block_t=block_t, period=P)
    return pl.pallas_call(
        kernel,
        out_shape=jax.ShapeDtypeStruct((B, T), x.dtype),
        grid_spec=pltpu.PrefetchScalarGridSpec(
            num_scalar_prefetch=0,
            grid=grid,
            in_specs=[
                pl.BlockSpec((block_b, block_t), lambda i, j: (i, j)),
                # Resident noise period: block index is constant along j, so Pallas
                # only DMAs it once per batch block (no per-time-tile refetch).
                pl.BlockSpec((block_b, P), lambda i, j: (i, 0)),
                pl.BlockSpec((block_b, 1), lambda i, j: (i, 0)),
            ],
            out_specs=pl.BlockSpec((block_b, block_t), lambda i, j: (i, j)),
        ),
        compiler_params=pltpu.CompilerParams(
            dimension_semantics=("parallel", "parallel"),
            vmem_limit_bytes=vmem_limit,
        ),
        input_output_aliases={0: 0},  # in-place: x is donated by the jitted caller
    )(x, noise_period, scale)


# ----------------------------------------------------------------------------
# Colored-noise period generation (plain JAX; mirrors torch_audiomentations._gen_noise)
# ----------------------------------------------------------------------------
def _gen_noise_period(key, f_decay, sample_rate):
    # TODO(synk): rfft/irfft spectral shaping has no Pallas primitive; kept in plain JAX.
    white = jax.random.normal(key, (sample_rate,), dtype=jnp.float32)
    spec = jnp.fft.rfft(white)
    freq_mask = 1.0 / (
        jnp.linspace(1.0, (sample_rate / 2.0) ** 0.5, spec.shape[0]) ** f_decay
    )
    n = jnp.fft.irfft(spec * freq_mask, n=sample_rate)
    # RMS-normalize the single period, exactly like torch_audiomentations'
    # Audio.rms_normalize (so the tiled noise has unit RMS and no further
    # per-(B, T) rms(noise) pass is needed).
    rms = jnp.sqrt(jnp.mean(jnp.square(n)))
    return (n / jnp.maximum(rms, 1e-12)).astype(jnp.float32)


# ----------------------------------------------------------------------------
# Jitted end-to-end transform (glue fuses; x is donated so the Pallas in-place
# aliasing is copy-free).
# ----------------------------------------------------------------------------
@partial(
    jax.jit,
    static_argnames=("sample_rate", "p", "min_snr_in_db", "max_snr_in_db",
                     "min_f_decay", "max_f_decay"),
    donate_argnums=(0,),
)
def _colored_noise_impl(x, key, *, sample_rate, p, min_snr_in_db, max_snr_in_db,
                        min_f_decay, max_f_decay):
    B, T = x.shape
    P = int(sample_rate)
    x = x.astype(jnp.float32)

    k_snr, k_fd, k_apply, k_noise = jax.random.split(key, 4)
    snr_db = jax.random.uniform(k_snr, (B,), minval=min_snr_in_db, maxval=max_snr_in_db)
    f_decay = jax.random.uniform(k_fd, (B,), minval=min_f_decay, maxval=max_f_decay)
    apply_mask = (jax.random.uniform(k_apply, (B,)) < p).astype(jnp.float32)

    # One noise period per row, RMS-normalized (matches the reference exactly).
    noise_keys = jax.random.split(k_noise, B)
    period = jax.vmap(lambda kk, fd: _gen_noise_period(kk, fd, P))(noise_keys, f_decay)

    # Per-row scale hoisted out of the streaming kernel:
    #   scale_b = apply_b * rms(x_b) / 10^(snr_b/20)   (period already has rms 1)
    rms_x = jnp.sqrt(jnp.mean(jnp.square(x), axis=-1, keepdims=True))
    scale = (apply_mask[:, None] * rms_x / (10.0 ** (snr_db[:, None] / 20.0))
             ).astype(jnp.float32)

    return add_periodic_noise_pallas(x, period, scale)


class ColoredNoise:
    """JAX/Pallas equivalent of the PyTorch ColoredNoise transform.

    NOTE: the input buffer `x` is donated (consumed) so the Pallas kernel can
    write in place without a defensive copy; do not reuse `x` after the call.
    """

    def __init__(self, sample_rate, p, min_snr_in_db=3.0, max_snr_in_db=30.0,
                 min_f_decay=-2.0, max_f_decay=2.0):
        self.sample_rate = int(sample_rate)
        self.p = float(p)
        self.min_snr_in_db = float(min_snr_in_db)
        self.max_snr_in_db = float(max_snr_in_db)
        self.min_f_decay = float(min_f_decay)
        self.max_f_decay = float(max_f_decay)

    def __call__(self, x, key):
        # PyTorch: input.unsqueeze(1) -> (B, 1, T) -> aug -> squeeze(1).
        # The channel dim is size 1, so we work directly on (B, T).
        return _colored_noise_impl(
            x, key,
            sample_rate=self.sample_rate, p=self.p,
            min_snr_in_db=self.min_snr_in_db, max_snr_in_db=self.max_snr_in_db,
            min_f_decay=self.min_f_decay, max_f_decay=self.max_f_decay,
        )


if __name__ == "__main__":
    key = jax.random.PRNGKey(0)
    k_in, k_aug = jax.random.split(key)

    B, T = 16, 2048
    sample_rate = 2048

    # deterministic "audio" input: mix of a sine and a little randomness
    t = jnp.arange(T, dtype=jnp.float32) / sample_rate
    tone = 0.5 * jnp.sin(2.0 * jnp.pi * 220.0 * t)[None, :]
    x = tone + 0.05 * jax.random.normal(k_in, (B, T), dtype=jnp.float32)

    transform = ColoredNoise(sample_rate=sample_rate, p=1.0)
    out = transform(x, k_aug)   # x's buffer is donated here; do not reuse x after
    out = jax.block_until_ready(out)

    assert out.shape == (B, T) and out.dtype == jnp.float32
    assert bool(jnp.all(jnp.isfinite(out)))
    print("KERNEL_OK")
</pallas_src>

<mosaic_0001>
module attributes {stable_mosaic.version = 11 : i64} {
  func.func @_add_periodic_noise_kernel(%arg0: i32, %arg1: i32, %arg2: memref<8x2048xf32, #tpu.memory_space<vmem>>, %arg3: memref<8x2048xf32, #tpu.memory_space<vmem>>, %arg4: memref<8x1xf32, #tpu.memory_space<vmem>>, %arg5: memref<8x2048xf32, #tpu.memory_space<vmem>>) attributes {dimension_semantics = [#tpu.dimension_semantics<parallel>, #tpu.dimension_semantics<parallel>], iteration_bounds = array<i64: 2, 1>, scalar_prefetch = 0 : i64, scratch_operands = 0 : i64, tpu.core_type = #tpu.core_type<tc>, window_params = [{transform_indices = @transform_0, window_bounds = array<i64: 8, 2048>}, {transform_indices = @transform_1, window_bounds = array<i64: 8, 2048>}, {transform_indices = @transform_2, window_bounds = array<i64: 8, 1>}, {transform_indices = @transform_3, window_bounds = array<i64: 8, 2048>}]} {
    %c0 = arith.constant 0 : index
    %c0_0 = arith.constant 0 : index
    %0 = vector.load %arg3[%c0, %c0_0] : memref<8x2048xf32, #tpu.memory_space<vmem>>, vector<8x2048xf32>
    %c0_1 = arith.constant 0 : index
    %c0_2 = arith.constant 0 : index
    %1 = vector.load %arg2[%c0_1, %c0_2] : memref<8x2048xf32, #tpu.memory_space<vmem>>, vector<8x2048xf32>
    %c0_3 = arith.constant 0 : index
    %c0_4 = arith.constant 0 : index
    %2 = vector.load %arg4[%c0_3, %c0_4] : memref<8x1xf32, #tpu.memory_space<vmem>>, vector<8x1xf32>
    %3 = vector.broadcast %2 : vector<8x1xf32> to vector<8x2048xf32>
    %4 = arith.mulf %3, %0 : vector<8x2048xf32>
    %5 = arith.addf %1, %4 : vector<8x2048xf32>
    %c0_5 = arith.constant 0 : index
    %c0_6 = arith.constant 0 : index
    %6 = vector.load %arg5[%c0_5, %c0_6] : memref<8x2048xf32, #tpu.memory_space<vmem>>, vector<8x2048xf32>
    tpu.vector_store %arg5[%c0_5, %c0_6], %5 {strides = array<i32>} : memref<8x2048xf32, #tpu.memory_space<vmem>>, vector<8x2048xf32>,
    return
  }
  func.func @transform_0(%arg0: i32, %arg1: i32) -> (i32, i32) {
    %c0_i32 = arith.constant 0 : i32
    return %arg0, %arg1 : i32, i32
  }
  func.func @transform_1(%arg0: i32, %arg1: i32) -> (i32, i32) {
    %c0_i32 = arith.constant 0 : i32
    %c0_i32_0 = arith.constant 0 : i32
    return %arg0, %c0_i32 : i32, i32
  }
  func.func @transform_2(%arg0: i32, %arg1: i32) -> (i32, i32) {
    %c0_i32 = arith.constant 0 : i32
    %c0_i32_0 = arith.constant 0 : i32
    return %arg0, %c0_i32 : i32, i32
  }
  func.func @transform_3(%arg0: i32, %arg1: i32) -> (i32, i32) {
    %c0_i32 = arith.constant 0 : i32
    return %arg0, %arg1 : i32, i32
  }
}

</mosaic_0001>

<llo_original>
// kernel: reverse.3
$region0: #{reverse.3}
  %s0 = inlined_call_operand.vmem [shape: f32[16,1024], index: 0, kind: input, shape index: {}]
  %s1 = inlined_call_operand.vmem [shape: f32[16,1024], index: 1, kind: output, shape index: {}]
  %v2 = vlaneseq
  %v3 = vsub.s32 127, %v2
  %4 = vset.pattern.permute.xlu0 %v3
  $region1: #{reverse.3} parent=0
    #allocation0 [shape = 'u8[16384]{0}', space=vmem, size = 0x4000, scoped, tag = 'operand span for operand 0']
    #allocation1 [shape = 'u8[16384]{0}', space=vmem, size = 0x4000, scoped, tag = 'operand span for operand 1']
    loop: start=0, step=1, limit=10
    $region2: #{reverse.3} parent=1 // loop_pre_header
      _
    $region3: #{reverse.3} parent=1 // loop_header
      %s6 = sphi 0, %s10
      %p7 = scmp.ge.s32.totalorder %s6, 10
      %s13 = sphi 0, %s25
      %s14 = sphi 0, %s21
      %s15 = sphi 0, %s13
      %s16 = sphi 0, %s14
      %s17 = sphi 0, %s15
      %s18 = sphi 0, %s16
    $region4: #{reverse.3} parent=1 // loop_header_branch
      %9 = sbr.rel (%p7) target = $region8
    $region5: #{reverse.3} parent=1 // loop_body
      %s11 = ssub.s32 %s6, 1
      %s12 = ssub.s32 %s6, 2
      %s19 = sadd.s32 1, %s14
      %p20 = scmp.ge.s32.totalorder %s19, 8
      %s21 = scalar_select %p20, 0, %s19
      %s22 = sadd.s32 1, %s13
      %s23 = scalar_select %p20, %s22, %s13
      %p24 = scmp.ge.s32.totalorder %s23, 1
      %s25 = scalar_select %p24, 0, %s23
      %p26 = scmp.le.s32.totalorder 1, %s6
      %p27 = scmp.lt.s32.totalorder %s6, 9
      %p28 = pnand %p26, %p27
      %p29 = pneg %p28
      // Predicated region
      $region9: #{reverse.3} parent=5 // pred_check
        _
      $region10: #{reverse.3} parent=5 // pred_check_branch
        %31 = sbr.rel (%p28) target = $region12
      $region11: #{reverse.3} parent=5 // pred_region
        %s32 = ssub.s32 %s6, 1
      $region12: #{reverse.3} parent=5 // pred_fallthru
        _
      %p33 = scmp.lt.s32.totalorder %s6, 8
      // Predicated region
      $region13: #{reverse.3} parent=5 // pred_check
        %p34 = pneg %p33
      $region14: #{reverse.3} parent=5 // pred_check_branch
        %36 = sbr.rel (%p34) target = $region16
      $region15: #{reverse.3} parent=5 // pred_region
        %s37 = sand.u32 %s6, 1
        %s38 = sand.u32 %s6, 1
        %s39 = smul.addr %s38, 16
        %s40 = scalar_lea.vmem [#allocation0], %s39
        %s41 = ssub.s32 7, %s14
        %s42 = smul.u32 2, %s13
        %s43 = smul.addr %s42, 8
        %s44 = sadd.s32 %s41, %s43
        %s45 = smul.addr %s44, 8
        %s46 = scalar_lea.vmem %s0, %s45
        // Predicated region
        $region17: #{reverse.3} parent=15 // pred_check
          _
        $region18: #{reverse.3} parent=15 // pred_check_branch
          %48 = sbr.rel (0) target = $region20
        $region19: #{reverse.3} parent=15 // pred_region
          // Predicated region
          $region21: #{reverse.3} parent=19 // pred_check
            _
          $region22: #{reverse.3} parent=19 // pred_check_branch
            %50 = sbr.rel (0) target = $region24
          $region23: #{reverse.3} parent=19 // pred_region
            // Predicated region
            $region36: #{reverse.3} parent=23 // pred_check
              _
            $region37: #{reverse.3} parent=23 // pred_check_branch
              %67 = sbr.rel (0) target = $region39
            $region38: #{reverse.3} parent=23 // pred_region
              loop: start=0, step=1, limit=1
              $region40: #{reverse.3} parent=38 // loop_pre_header
                _
              $region41: #{reverse.3} parent=38 // loop_header
                %s69 = sphi 0, %s73
                %p70 = scmp.ge.s32.totalorder %s69, 1
                %s74 = sphi %s46, %s46
                %s75 = sphi %s40, %s40
              $region42: #{reverse.3} parent=38 // loop_header_branch
                %72 = sbr.rel (%p70) target = $region46
              $region43: #{reverse.3} parent=38 // loop_body
                %v76 = vld [vmem:[%s74] sm:$0xff]
                %77 = vst [vmem:[%s75] sm:$0xff] %v76
                %v78 = vld [vmem:[%s74 + $0x40] sm:$0xff]
                %79 = vst [vmem:[%s75 + $0x8] sm:$0xff] %v78
              $region44: #{reverse.3} parent=38 // loop_footer
                %s73 = sadd.s32 1, %s69
              $region45: #{reverse.3} parent=38 // loop_footer_branch
                %68 = sbr.rel target = $region41
              $region46: #{reverse.3} parent=38 // loop_exit
                _
            $region39: #{reverse.3} parent=23 // pred_fallthru
              _
            // Predicated region
            $region47: #{reverse.3} parent=23 // pred_check
              _
            $region48: #{reverse.3} parent=23 // pred_check_branch
              %81 = sbr.rel target = $region50
            $region49: #{reverse.3} parent=23 // pred_region
              _
            $region50: #{reverse.3} parent=23 // pred_fallthru
              _
          $region24: #{reverse.3} parent=19 // pred_fallthru
            _
          // Predicated region
          $region25: #{reverse.3} parent=19 // pred_check
            _
          $region26: #{reverse.3} parent=19 // pred_check_branch
            %52 = sbr.rel target = $region28
          $region27: #{reverse.3} parent=19 // pred_region
            loop: start=0, step=1, limit=1
            $region29: #{reverse.3} parent=27 // loop_pre_header
              _
            $region30: #{reverse.3} parent=27 // loop_header
              %s55 = sphi 0, %s59
              %p56 = scmp.ge.s32.totalorder %s55, 1
              %s60 = sphi %s46, %s46
              %s61 = sphi %s40, %s40
            $region31: #{reverse.3} parent=27 // loop_header_branch
              %58 = sbr.rel (%p56) target = $region35
            $region32: #{reverse.3} parent=27 // loop_body
              %v62 = vld [vmem:[%s60] sm:$0xff]
              %63 = vst [vmem:[%s61] sm:$0xff] %v62
              %v64 = vld [vmem:[%s60 + $0x40] sm:$0xff]
              %65 = vst [vmem:[%s61 + $0x8] sm:$0xff] %v64
            $region33: #{reverse.3} parent=27 // loop_footer
              %s59 = sadd.s32 1, %s55
            $region34: #{reverse.3} parent=27 // loop_footer_branch
              %54 = sbr.rel target = $region30
            $region35: #{reverse.3} parent=27 // loop_exit
              _
          $region28: #{reverse.3} parent=19 // pred_fallthru
            _
        $region20: #{reverse.3} parent=15 // pred_fallthru
          _
        %82 = vnop
      $region16: #{reverse.3} parent=5 // pred_fallthru
        _
      %p83 = scmp.le.s32.totalorder 1, %s6
      %p84 = scmp.lt.s32.totalorder %s6, 9
      %p85 = pnand %p83, %p84
      %p86 = pneg %p85
      // Predicated region
      $region51: #{reverse.3} parent=5 // pred_check
        _
      $region52: #{reverse.3} parent=5 // pred_check_branch
        %88 = sbr.rel (%p85) target = $region54
      $region53: #{reverse.3} parent=5 // pred_region
        %s89 = ssub.s32 %s6, 1
        %s90 = sand.u32 %s11, 1
        %s91 = sand.u32 %s11, 1
        %s92 = smul.addr %s91, 16
        %s93 = scalar_lea.vmem [#allocation0], %s92
        %s94 = sand.u32 %s11, 1
        %s95 = sand.u32 %s11, 1
        %s96 = smul.addr %s95, 16
        %s97 = scalar_lea.vmem [#allocation0], %s96
        %s98 = sand.u32 %s11, 1
        %s99 = sand.u32 %s11, 1
        %s100 = smul.addr %s99, 16
        %s101 = scalar_lea.vmem [#allocation1], %s100
        %s102 = ssub.s32 7, %s16
        %s103 = smul.u32 2, %s15
        %s104 = smul.u32 2, %s15
        %v105 = vld [vmem:[%s93] sm:$0xff]
        %106 = vperm.xlu0 %4, %v105
        %v107 = vpop.permute.xlu0 %106
        %108 = vst [vmem:[%s101] sm:$0xff] %v107
        %s109 = scalar_lea.vmem %s101, 8 [#allocation1]
        %s110 = scalar_lea.vmem %s93, 8 [#allocation0]
        %v111 = vld [vmem:[%s110] sm:$0xff]
        %112 = vperm.xlu0 %4, %v111
        %v113 = vpop.permute.xlu0 %112
        %114 = vst [vmem:[%s109] sm:$0xff] %v113
        %s115 = sand.u32 %s11, 1
        %s116 = sand.u32 %s11, 1
        %s117 = smul.addr %s116, 16
        %s118 = scalar_lea.vmem [#allocation1], %s117
        %s119 = smul.u32 2, %s15
        %s120 = smul.addr %s119, 8
        %s121 = sadd.s32 %s16, %s120
        %s122 = smul.addr %s121, 8
        %s123 = scalar_lea.vmem %s1, %s122
        // Predicated region
        $region55: #{reverse.3} parent=53 // pred_check
          _
        $region56: #{reverse.3} parent=53 // pred_check_branch
          %125 = sbr.rel (0) target = $region58
        $region57: #{reverse.3} parent=53 // pred_region
          // Predicated region
          $region59: #{reverse.3} parent=57 // pred_check
            _
          $region60: #{reverse.3} parent=57 // pred_check_branch
            %127 = sbr.rel (0) target = $region62
          $region61: #{reverse.3} parent=57 // pred_region
            // Predicated region
            $region74: #{reverse.3} parent=61 // pred_check
              _
            $region75: #{reverse.3} parent=61 // pred_check_branch
              %144 = sbr.rel (0) target = $region77
            $region76: #{reverse.3} parent=61 // pred_region
              loop: start=0, step=1, limit=1
              $region78: #{reverse.3} parent=76 // loop_pre_header
                _
              $region79: #{reverse.3} parent=76 // loop_header
                %s146 = sphi 0, %s150
                %p147 = scmp.ge.s32.totalorder %s146, 1
                %s151 = sphi %s118, %s118
                %s152 = sphi %s123, %s123
              $region80: #{reverse.3} parent=76 // loop_header_branch
                %149 = sbr.rel (%p147) target = $region84
              $region81: #{reverse.3} parent=76 // loop_body
                %v153 = vld [vmem:[%s151] sm:$0xff]
                %154 = vst [vmem:[%s152] sm:$0xff] %v153
                %v155 = vld [vmem:[%s151 + $0x8] sm:$0xff]
                %156 = vst [vmem:[%s152 + $0x40] sm:$0xff] %v155
              $region82: #{reverse.3} parent=76 // loop_footer
                %s150 = sadd.s32 1, %s146
              $region83: #{reverse.3} parent=76 // loop_footer_branch
                %145 = sbr.rel target = $region79
              $region84: #{reverse.3} parent=76 // loop_exit
                _
            $region77: #{reverse.3} parent=61 // pred_fallthru
              _
            // Predicated region
            $region85: #{reverse.3} parent=61 // pred_check
              _
            $region86: #{reverse.3} parent=61 // pred_check_branch
              %158 = sbr.rel target = $region88
            $region87: #{reverse.3} parent=61 // pred_region
              _
            $region88: #{reverse.3} parent=61 // pred_fallthru
              _
          $region62: #{reverse.3} parent=57 // pred_fallthru
            _
          // Predicated region
          $region63: #{reverse.3} parent=57 // pred_check
            _
          $region64: #{reverse.3} parent=57 // pred_check_branch
            %129 = sbr.rel target = $region66
          $region65: #{reverse.3} parent=57 // pred_region
            loop: start=0, step=1, limit=1
            $region67: #{reverse.3} parent=65 // loop_pre_header
              _
            $region68: #{reverse.3} parent=65 // loop_header
              %s132 = sphi 0, %s136
              %p133 = scmp.ge.s32.totalorder %s132, 1
              %s137 = sphi %s118, %s118
              %s138 = sphi %s123, %s123
            $region69: #{reverse.3} parent=65 // loop_header_branch
              %135 = sbr.rel (%p133) target = $region73
            $region70: #{reverse.3} parent=65 // loop_body
              %v139 = vld [vmem:[%s137] sm:$0xff]
              %140 = vst [vmem:[%s138] sm:$0xff] %v139
              %v141 = vld [vmem:[%s137 + $0x8] sm:$0xff]
              %142 = vst [vmem:[%s138 + $0x40] sm:$0xff] %v141
            $region71: #{reverse.3} parent=65 // loop_footer
              %s136 = sadd.s32 1, %s132
            $region72: #{reverse.3} parent=65 // loop_footer_branch
              %131 = sbr.rel target = $region68
            $region73: #{reverse.3} parent=65 // loop_exit
              _
          $region66: #{reverse.3} parent=57 // pred_fallthru
            _
        $region58: #{reverse.3} parent=53 // pred_fallthru
          _
        %159 = vnop
      $region54: #{reverse.3} parent=5 // pred_fallthru
        _
      %p160 = scmp.le.s32.totalorder 2, %s6
      // Predicated region
      $region89: #{reverse.3} parent=5 // pred_check
        %p161 = pneg %p160
      $region90: #{reverse.3} parent=5 // pred_check_branch
        %163 = sbr.rel (%p161) target = $region92
      $region91: #{reverse.3} parent=5 // pred_region
        %s164 = ssub.s32 %s6, 2
        %s165 = sand.u32 %s12, 1
        %s166 = sand.u32 %s12, 1
        %s167 = smul.addr %s166, 16
        %s168 = scalar_lea.vmem [#allocation1], %s167
      $region92: #{reverse.3} parent=5 // pred_fallthru
        _
    $region6: #{reverse.3} parent=1 // loop_footer
      %s10 = sadd.s32 1, %s6
    $region7: #{reverse.3} parent=1 // loop_footer_branch
      %5 = sbr.rel target = $region3
    $region8: #{reverse.3} parent=1 // loop_exit
      _

// kernel: _colored_noise_impl.4
$region0: #{_colored_noise_impl.4}
  #allocation0 [shape = 'u32[]', space=smem, size = 0x4, offset = 0x4, fixed_abs, tag = 'smem constant byte address 0x4 - core index']
  #allocation1 [shape = 'u32[144,128]{1,0:T(1,128)}', space=vmem, size = 0x12000, scoped, tag = 'internal scratch']
  %s0 = inlined_call_operand.hbm [shape: f32[16,2048], index: 0, kind: input, shape index: {}, may-alias: {0,3}]
  %s1 = inlined_call_operand.vmem [shape: f32[16,2048], index: 1, kind: input, shape index: {}]
  %s2 = inlined_call_operand.vmem [shape: f32[16,1], index: 2, kind: input, shape index: {}]
  %s3 = inlined_call_operand.hbm [shape: f32[16,2048], index: 3, kind: output, shape index: {}, may-alias: {0,3}]
  %s4 = sld [smem:[#allocation0]]
  $region49: #{_colored_noise_impl.4} parent=0
    _
  %s6 = ssub.s32 1, %s4
  %s7 = scalar_select 0, %s6, %s4
  $region1: #{_colored_noise_impl.4} parent=0
    #allocation2 [shape = 'u8[131072]{0}', space=vmem, size = 0x20000, scoped, tag = 'input window, operand 0']
    #allocation3 [shape = 's32[2]{0}', space=sflag, size = 0x8, scoped, tag = 'scoped memory for _colored_noise_impl.4']
    #allocation4 [shape = 's32[2]{0}', space=sflag, size = 0x8, scoped, tag = 'scoped memory for _colored_noise_impl.4']
    #allocation5 [shape = 'u8[131072]{0}', space=vmem, size = 0x20000, scoped, tag = 'output window, operand 0']
    %8 = vsyncpa [#allocation3], 0
    %s9 = scalar_lea.sflag [#allocation3], 1
    %10 = vsyncpa %s9, 0
    %11 = vsyncpa [#allocation4], 0
    %s12 = scalar_lea.sflag [#allocation4], 1
    %13 = vsyncpa %s12, 0
    loop: start=0, step=1, limit=4
    $region2: #{_colored_noise_impl.4} parent=1 // loop_pre_header
      _
    $region3: #{_colored_noise_impl.4} parent=1 // loop_header
      %s15 = sphi 0, %s19
      %p16 = scmp.ge.s32.totalorder %s15, 4
      %s22 = sphi 0, %s34
      %s23 = sphi 0, %s30
      %s24 = sphi 0, %s22
      %s25 = sphi 0, %s23
      %s26 = sphi 0, %s24
      %s27 = sphi 0, %s25
      %s39 = sphi 0, %s41
      %s42 = sphi 0, %s39
      %s43 = sphi 0, %s42
      %s59 = sphi 0, %s43
      %s65 = sphi 0, %s67
      %s68 = sphi 0, %s65
      %s69 = sphi 0, %s68
      %s85 = sphi 0, %s69
      %s91 = sphi 0, %s93
      %s94 = sphi 0, %s91
      %s95 = sphi 0, %s94
      %s111 = sphi 0, %s95
      %s119 = sphi 0, %s121
      %s122 = sphi 0, %s119
      %s123 = sphi 0, %s122
      %s139 = sphi 0, %s123
    $region4: #{_colored_noise_impl.4} parent=1 // loop_header_branch
      %18 = sbr.rel (%p16) target = $region8
    $region5: #{_colored_noise_impl.4} parent=1 // loop_body
      %s20 = ssub.s32 %s15, 1
      %s21 = ssub.s32 %s15, 2
      %s28 = sadd.s32 1, %s23
      %p29 = scmp.ge.s32.totalorder %s28, 1
      %s30 = scalar_select %p29, 0, %s28
      %s31 = sadd.s32 1, %s22
      %s32 = scalar_select %p29, %s31, %s22
      %p33 = scmp.ge.s32.totalorder %s32, 2
      %s34 = scalar_select %p33, 0, %s32
      %s35 = ssub.s32 %s22, %s34
      %s36 = ssub.s32 %s23, %s30
      %s37 = sor.u32 %s35, %s36
      %p38 = scmp.eq.s32.totalorder %s37, 0
      %s40 = sadd.s32 %s39, 1
      %s41 = scalar_select %p38, %s39, %s40
      %p44 = pneg %p38
      %p45 = scmp.eq.s32.totalorder %s15, 1
      %p46 = por %p44, %p45
      %p47 = scmp.ne.s32.totalorder %s39, %s42
      %p48 = scmp.eq.s32.totalorder %s15, 0
      %p49 = por %p47, %p48
      %p50 = scmp.ne.s32.totalorder %s39, %s42
      %p51 = scmp.eq.s32.totalorder %s20, 1
      %p52 = por %p50, %p51
      %p53 = scmp.ne.s32.totalorder %s42, %s43
      %p54 = scmp.eq.s32.totalorder %s20, 0
      %p55 = por %p53, %p54
      %p56 = scmp.ne.s32.totalorder %s42, %s43
      %p57 = scmp.eq.s32.totalorder %s21, 1
      %p58 = por %p56, %p57
      %p60 = scmp.ne.s32.totalorder %s43, %s59
      %p61 = scmp.eq.s32.totalorder %s21, 0
      %p62 = por %p60, %p61
      %s63 = ssub.s32 %s22, %s34
      %p64 = scmp.eq.s32.totalorder %s63, 0
      %s66 = sadd.s32 %s65, 1
      %s67 = scalar_select %p64, %s65, %s66
      %p70 = pneg %p64
      %p71 = scmp.eq.s32.totalorder %s15, 1
      %p72 = por %p70, %p71
      %p73 = scmp.ne.s32.totalorder %s65, %s68
      %p74 = scmp.eq.s32.totalorder %s15, 0
      %p75 = por %p73, %p74
      %p76 = scmp.ne.s32.totalorder %s65, %s68
      %p77 = scmp.eq.s32.totalorder %s20, 1
      %p78 = por %p76, %p77
      %p79 = scmp.ne.s32.totalorder %s68, %s69
      %p80 = scmp.eq.s32.totalorder %s20, 0
      %p81 = por %p79, %p80
      %p82 = scmp.ne.s32.totalorder %s68, %s69
      %p83 = scmp.eq.s32.totalorder %s21, 1
      %p84 = por %p82, %p83
      %p86 = scmp.ne.s32.totalorder %s69, %s85
      %p87 = scmp.eq.s32.totalorder %s21, 0
      %p88 = por %p86, %p87
      %s89 = ssub.s32 %s22, %s34
      %p90 = scmp.eq.s32.totalorder %s89, 0
      %s92 = sadd.s32 %s91, 1
      %s93 = scalar_select %p90, %s91, %s92
      %p96 = pneg %p90
      %p97 = scmp.eq.s32.totalorder %s15, 1
      %p98 = por %p96, %p97
      %p99 = scmp.ne.s32.totalorder %s91, %s94
      %p100 = scmp.eq.s32.totalorder %s15, 0
      %p101 = por %p99, %p100
      %p102 = scmp.ne.s32.totalorder %s91, %s94
      %p103 = scmp.eq.s32.totalorder %s20, 1
      %p104 = por %p102, %p103
      %p105 = scmp.ne.s32.totalorder %s94, %s95
      %p106 = scmp.eq.s32.totalorder %s20, 0
      %p107 = por %p105, %p106
      %p108 = scmp.ne.s32.totalorder %s94, %s95
      %p109 = scmp.eq.s32.totalorder %s21, 1
      %p110 = por %p108, %p109
      %p112 = scmp.ne.s32.totalorder %s95, %s111
      %p113 = scmp.eq.s32.totalorder %s21, 0
      %p114 = por %p112, %p113
      %s115 = ssub.s32 %s22, %s34
      %s116 = ssub.s32 %s23, %s30
      %s117 = sor.u32 %s115, %s116
      %p118 = scmp.eq.s32.totalorder %s117, 0
      %s120 = sadd.s32 %s119, 1
      %s121 = scalar_select %p118, %s119, %s120
      %p124 = pneg %p118
      %p125 = scmp.eq.s32.totalorder %s15, 1
      %p126 = por %p124, %p125
      %p127 = scmp.ne.s32.totalorder %s119, %s122
      %p128 = scmp.eq.s32.totalorder %s15, 0
      %p129 = por %p127, %p128
      %p130 = scmp.ne.s32.totalorder %s119, %s122
      %p131 = scmp.eq.s32.totalorder %s20, 1
      %p132 = por %p130, %p131
      %p133 = scmp.ne.s32.totalorder %s122, %s123
      %p134 = scmp.eq.s32.totalorder %s20, 0
      %p135 = por %p133, %p134
      %p136 = scmp.ne.s32.totalorder %s122, %s123
      %p137 = scmp.eq.s32.totalorder %s21, 1
      %p138 = por %p136, %p137
      %p140 = scmp.ne.s32.totalorder %s123, %s139
      %p141 = scmp.eq.s32.totalorder %s21, 0
      %p142 = por %p140, %p141
      %p143 = scmp.le.s32.totalorder 1, %s15
      %p144 = scmp.lt.s32.totalorder %s15, 3
      %p145 = pnand %p143, %p144
      %p146 = pneg %p145
      // Predicated region
      $region9: #{_colored_noise_impl.4} parent=5 // pred_check
        _
      $region10: #{_colored_noise_impl.4} parent=5 // pred_check_branch
        %148 = sbr.rel (%p145) target = $region12
      $region11: #{_colored_noise_impl.4} parent=5 // pred_region
        %s149 = ssub.s32 %s15, 1
      $region12: #{_colored_noise_impl.4} parent=5 // pred_fallthru
        _
      %p150 = scmp.lt.s32.totalorder %s15, 2
      // Predicated region
      $region13: #{_colored_noise_impl.4} parent=5 // pred_check
        %p151 = pneg %p150
      $region14: #{_colored_noise_impl.4} parent=5 // pred_check_branch
        %153 = sbr.rel (%p151) target = $region16
      $region15: #{_colored_noise_impl.4} parent=5 // pred_region
        // Predicated region
        $region17: #{_colored_noise_impl.4} parent=15 // pred_check
          %p154 = pneg %p49
        $region18: #{_colored_noise_impl.4} parent=15 // pred_check_branch
          %156 = sbr.rel (%p154) target = $region20
        $region19: #{_colored_noise_impl.4} parent=15 // pred_region
          %s157 = sand.u32 %s39, 1
          %s158 = scalar_lea.sflag [#allocation3], %s157
          %s159 = sand.u32 %s39, 1
          %s160 = smul.addr %s159, 128
          %s161 = scalar_lea.vmem [#allocation2], %s160
          %s162 = smul.u32 16, %s23
          %s164 = ssub.s32 2048, 2048
          %165 = vsyncadd %s158, %s164
          %s166 = smul.addr %s22, 16
          %s167 = sadd.s32 %s162, %s166
          %s168 = smul.addr %s167, 128
          %s169 = scalar_lea.hbm %s0, %s168
          %s171 = sshll.u32 %s161, 4
          %s172 = int_to_ptr.vmem [resolvable:$true] %s171
          %174 = dma.hbm_to_vmem [thread:$0]  %s169, 2048, %s172, %s158
        $region20: #{_colored_noise_impl.4} parent=15 // pred_fallthru
          _
        // Predicated region
        $region21: #{_colored_noise_impl.4} parent=15 // pred_check
          %p175 = pneg %p75
        $region22: #{_colored_noise_impl.4} parent=15 // pred_check_branch
          %177 = sbr.rel (%p175) target = $region24
        $region23: #{_colored_noise_impl.4} parent=15 // pred_region
          %p178 = scmp.lt.s32.totalorder %s22, 1
          %s179 = scalar_select %p178, %s22, 1
          %s180 = smul.addr %s179, 16
          %s181 = smul.addr %s180, 8
          %s182 = scalar_lea.vmem %s1, %s181
        $region24: #{_colored_noise_impl.4} parent=15 // pred_fallthru
          _
        // Predicated region
        $region25: #{_colored_noise_impl.4} parent=15 // pred_check
          %p183 = pneg %p101
        $region26: #{_colored_noise_impl.4} parent=15 // pred_check_branch
          %185 = sbr.rel (%p183) target = $region28
        $region27: #{_colored_noise_impl.4} parent=15 // pred_region
          %p186 = scmp.lt.s32.totalorder %s22, 1
          %s187 = scalar_select %p186, %s22, 1
          %s188 = smul.addr %s187, 8
          %s189 = scalar_lea.vmem %s2, %s188
        $region28: #{_colored_noise_impl.4} parent=15 // pred_fallthru
          _
      $region16: #{_colored_noise_impl.4} parent=5 // pred_fallthru
        _
      %p190 = scmp.le.s32.totalorder 1, %s15
      %p191 = scmp.lt.s32.totalorder %s15, 3
      %p192 = pnand %p190, %p191
      %p193 = pneg %p192
      // Predicated region
      $region29: #{_colored_noise_impl.4} parent=5 // pred_check
        _
      $region30: #{_colored_noise_impl.4} parent=5 // pred_check_branch
        %195 = sbr.rel (%p192) target = $region32
      $region31: #{_colored_noise_impl.4} parent=5 // pred_region
        %s196 = ssub.s32 %s15, 1
        %s197 = sand.u32 %s42, 1
        %s198 = scalar_lea.sflag [#allocation3], %s197
        %s199 = sand.u32 %s42, 1
        %s200 = smul.addr %s199, 128
        %s201 = scalar_lea.vmem [#allocation2], %s200
        // Predicated region
        $region33: #{_colored_noise_impl.4} parent=31 // pred_check
          %p202 = pneg %p55
        $region34: #{_colored_noise_impl.4} parent=31 // pred_check_branch
          %204 = sbr.rel (%p202) target = $region36
        $region35: #{_colored_noise_impl.4} parent=31 // pred_region
          %205 = dma.done %s198, 2048
        $region36: #{_colored_noise_impl.4} parent=31 // pred_fallthru
          _
        %s206 = sand.u32 %s42, 1
        %s207 = scalar_lea.sflag [#allocation3], %s206
        %s208 = sand.u32 %s42, 1
        %s209 = smul.addr %s208, 128
        %s210 = scalar_lea.vmem [#allocation2], %s209
        %p211 = pneg %p55
        %p212 = pneg %p52
        %p213 = scmp.lt.s32.totalorder %s24, 1
        %s214 = scalar_select %p213, %s24, 1
        %s215 = smul.addr %s214, 16
        %s216 = smul.addr %s215, 8
        %s217 = scalar_lea.vmem %s1, %s216
        %p218 = pneg %p81
        %p219 = pneg %p78
        %p220 = scmp.lt.s32.totalorder %s24, 1
        %s221 = scalar_select %p220, %s24, 1
        %s222 = smul.addr %s221, 8
        %s223 = scalar_lea.vmem %s2, %s222
        %p224 = pneg %p107
        %p225 = pneg %p104
        %p226 = pneg %p135
        %p227 = pneg %p132
        %s228 = sand.u32 %s122, 1
        %s229 = scalar_lea.sflag [#allocation4], %s228
        %s230 = sand.u32 %s122, 1
        %s231 = smul.addr %s230, 128
        %s232 = scalar_lea.vmem [#allocation5], %s231
        %s233 = smul.u32 16, %s25
        %p234 = scmp.lt.s32.totalorder %s24, 1
        %s235 = scalar_select %p234, %s24, 1
        %s236 = smul.addr %s235, 16
        %s237 = smul.addr %s236, 8
        %s238 = scalar_lea.vmem %s1, %s237
        %p239 = scmp.lt.s32.totalorder %s24, 1
        %s240 = scalar_select %p239, %s24, 1
        %s241 = smul.addr %s240, 8
        %s242 = scalar_lea.vmem %s2, %s241
        %s243 = smul.u32 16, %s25
        %v244 = vld [vmem:[%s238] sm:$0xff]
        %v245 = vld [vmem:[%s238 + $0x8] sm:$0xff]
        %v246 = vld [vmem:[%s238 + $0x10] sm:$0xff]
        %v247 = vld [vmem:[%s238 + $0x18] sm:$0xff]
        %v248 = vld [vmem:[%s238 + $0x20] sm:$0xff]
        %v249 = vld [vmem:[%s238 + $0x28] sm:$0xff]
        %v250 = vld [vmem:[%s238 + $0x30] sm:$0xff]
        %v251 = vld [vmem:[%s238 + $0x38] sm:$0xff]
        %v252 = vld [vmem:[%s238 + $0x40] sm:$0xff]
        %v253 = vld [vmem:[%s238 + $0x48] sm:$0xff]
        %v254 = vld [vmem:[%s238 + $0x50] sm:$0xff]
        %v255 = vld [vmem:[%s238 + $0x58] sm:$0xff]
        %v256 = vld [vmem:[%s238 + $0x60] sm:$0xff]
        %v257 = vld [vmem:[%s238 + $0x68] sm:$0xff]
        %v258 = vld [vmem:[%s238 + $0x70] sm:$0xff]
        %v259 = vld [vmem:[%s238 + $0x78] sm:$0xff]
        %v260 = vld [vmem:[%s201] sm:$0xff]
        %v261 = vld [vmem:[%s201 + $0x8] sm:$0xff]
        %v262 = vld [vmem:[%s201 + $0x10] sm:$0xff]
        %v263 = vld [vmem:[%s201 + $0x18] sm:$0xff]
        %v264 = vld [vmem:[%s201 + $0x20] sm:$0xff]
        %v265 = vld [vmem:[%s201 + $0x28] sm:$0xff]
        %v266 = vld [vmem:[%s201 + $0x30] sm:$0xff]
        %v267 = vld [vmem:[%s201 + $0x38] sm:$0xff]
        %v268 = vld [vmem:[%s201 + $0x40] sm:$0xff]
        %v269 = vld [vmem:[%s201 + $0x48] sm:$0xff]
        %v270 = vld [vmem:[%s201 + $0x50] sm:$0xff]
        %v271 = vld [vmem:[%s201 + $0x58] sm:$0xff]
        %v272 = vld [vmem:[%s201 + $0x60] sm:$0xff]
        %v273 = vld [vmem:[%s201 + $0x68] sm:$0xff]
        %v274 = vld [vmem:[%s201 + $0x70] sm:$0xff]
        %v275 = vld [vmem:[%s201 + $0x78] sm:$0xff]
        %v276 = vld [vmem:[%s242] sm:$0xff]
        %278 = vset.pattern.permute.xlu0 0
        %279 = vperm.xlu0 %278, %v276
        %v280 = vpop.permute.xlu0 %279
        %v282 = vmul.f32 %v280, %v244
        %v283 = vmul.f32 %v280, %v245
        %v284 = vmul.f32 %v280, %v246
        %v285 = vmul.f32 %v280, %v247
        %v286 = vmul.f32 %v280, %v248
        %v287 = vmul.f32 %v280, %v249
        %v288 = vmul.f32 %v280, %v250
        %v289 = vmul.f32 %v280, %v251
        %v290 = vmul.f32 %v280, %v252
        %v291 = vmul.f32 %v280, %v253
        %v292 = vmul.f32 %v280, %v254
        %v293 = vmul.f32 %v280, %v255
        %v294 = vmul.f32 %v280, %v256
        %v295 = vmul.f32 %v280, %v257
        %v296 = vmul.f32 %v280, %v258
        %v297 = vmul.f32 %v280, %v259
        %v298 = vadd.f32 %v260, %v282
        %v299 = vadd.f32 %v261, %v283
        %v300 = vadd.f32 %v262, %v284
        %v301 = vadd.f32 %v263, %v285
        %v302 = vadd.f32 %v264, %v286
        %v303 = vadd.f32 %v265, %v287
        %v304 = vadd.f32 %v266, %v288
        %v305 = vadd.f32 %v267, %v289
        %v306 = vadd.f32 %v268, %v290
        %v307 = vadd.f32 %v269, %v291
        %v308 = vadd.f32 %v270, %v292
        %v309 = vadd.f32 %v271, %v293
        %v310 = vadd.f32 %v272, %v294
        %v311 = vadd.f32 %v273, %v295
        %v312 = vadd.f32 %v274, %v296
        %v313 = vadd.f32 %v275, %v297
        %314 = vst [vmem:[%s232] sm:$0xff] %v298
        %315 = vst [vmem:[%s232 + $0x8] sm:$0xff] %v299
        %316 = vst [vmem:[%s232 + $0x10] sm:$0xff] %v300
        %317 = vst [vmem:[%s232 + $0x18] sm:$0xff] %v301
        %318 = vst [vmem:[%s232 + $0x20] sm:$0xff] %v302
        %319 = vst [vmem:[%s232 + $0x28] sm:$0xff] %v303
        %320 = vst [vmem:[%s232 + $0x30] sm:$0xff] %v304
        %321 = vst [vmem:[%s232 + $0x38] sm:$0xff] %v305
        %322 = vst [vmem:[%s232 + $0x40] sm:$0xff] %v306
        %323 = vst [vmem:[%s232 + $0x48] sm:$0xff] %v307
        %324 = vst [vmem:[%s232 + $0x50] sm:$0xff] %v308
        %325 = vst [vmem:[%s232 + $0x58] sm:$0xff] %v309
        %326 = vst [vmem:[%s232 + $0x60] sm:$0xff] %v310
        %327 = vst [vmem:[%s232 + $0x68] sm:$0xff] %v311
        %328 = vst [vmem:[%s232 + $0x70] sm:$0xff] %v312
        %329 = vst [vmem:[%s232 + $0x78] sm:$0xff] %v313
        %s330 = sand.u32 %s122, 1
        %s331 = scalar_lea.sflag [#allocation4], %s330
        %s332 = sand.u32 %s122, 1
        %s333 = smul.addr %s332, 128
        %s334 = scalar_lea.vmem [#allocation5], %s333
        // Predicated region
        $region37: #{_colored_noise_impl.4} parent=31 // pred_check
          %p335 = pneg %p132
        $region38: #{_colored_noise_impl.4} parent=31 // pred_check_branch
          %337 = sbr.rel (%p335) target = $region40
        $region39: #{_colored_noise_impl.4} parent=31 // pred_region
          %s338 = smul.u32 16, %s25
          %s340 = ssub.s32 2048, 2048
          %341 = vsyncadd %s331, %s340
          %s342 = smul.addr %s24, 16
          %s343 = sadd.s32 %s338, %s342
          %s344 = smul.addr %s343, 128
          %s345 = scalar_lea.hbm %s3, %s344
          %s347 = sshll.u32 %s334, 4
          %s348 = int_to_ptr.vmem [resolvable:$true] %s347
          %350 = dma.vmem_to_hbm [thread:$0]  %s348, 2048, %s345, %s331
        $region40: #{_colored_noise_impl.4} parent=31 // pred_fallthru
          _
      $region32: #{_colored_noise_impl.4} parent=5 // pred_fallthru
        _
      %p351 = scmp.le.s32.totalorder 2, %s15
      // Predicated region
      $region41: #{_colored_noise_impl.4} parent=5 // pred_check
        %p352 = pneg %p351
      $region42: #{_colored_noise_impl.4} parent=5 // pred_check_branch
        %354 = sbr.rel (%p352) target = $region44
      $region43: #{_colored_noise_impl.4} parent=5 // pred_region
        %s355 = ssub.s32 %s15, 2
        // Predicated region
        $region45: #{_colored_noise_impl.4} parent=43 // pred_check
          %p356 = pneg %p138
        $region46: #{_colored_noise_impl.4} parent=43 // pred_check_branch
          %358 = sbr.rel (%p356) target = $region48
        $region47: #{_colored_noise_impl.4} parent=43 // pred_region
          %s359 = sand.u32 %s123, 1
          %s360 = scalar_lea.sflag [#allocation4], %s359
          %s361 = sand.u32 %s123, 1
          %s362 = smul.addr %s361, 128
          %s363 = scalar_lea.vmem [#allocation5], %s362
          %364 = dma.done %s360, 2048
        $region48: #{_colored_noise_impl.4} parent=43 // pred_fallthru
          _
      $region44: #{_colored_noise_impl.4} parent=5 // pred_fallthru
        _
    $region6: #{_colored_noise_impl.4} parent=1 // loop_footer
      %s19 = sadd.s32 1, %s15
    $region7: #{_colored_noise_impl.4} parent=1 // loop_footer_branch
      %14 = sbr.rel target = $region3
    $region8: #{_colored_noise_impl.4} parent=1 // loop_exit
      _
    %365 = vsyncpa [#allocation3], 1
    %s366 = scalar_lea.sflag [#allocation3], 1
    %367 = vsyncpa %s366, 1
    %368 = vsyncpa [#allocation4], 1
    %s369 = scalar_lea.sflag [#allocation4], 1
    %370 = vsyncpa %s369, 1

</llo_original>
